<compile_context>
chip_gen: v6e
topology: v6e:2x2x1
jax: 0.10.0
libtpu: 0.0.40
codegen_flags: <defaults>
</compile_context>

<pallas_src>
import jax
import jax.numpy as jnp
from jax.experimental import pallas as pl
from jax.experimental.pallas import tpu as pltpu


# ---------------------------------------------------------------------------
# Tiled matmul kernel (q/k/v/o projections: y = x @ W^T, bias-free).
# ---------------------------------------------------------------------------
def _matmul_kernel(a_ref, b_ref, o_ref, acc_ref):
    @pl.when(pl.program_id(2) == 0)
    def _():
        acc_ref[...] = jnp.zeros_like(acc_ref)

    acc_ref[...] += jnp.dot(a_ref[...], b_ref[...],
                            preferred_element_type=jnp.float32)

    # Store only on the last K step (avoids K/tk redundant vst work).
    @pl.when(pl.program_id(2) == pl.num_programs(2) - 1)
    def _():
        o_ref[...] = acc_ref[...].astype(o_ref.dtype)


def _round_up(x, m):
    return ((x + m - 1) // m) * m


def pallas_matmul(a, b, *, tm=256, tn=256, tk=512):
    """y = a @ b via a tiled Pallas matmul with f32 accumulation.
    Non-divisible shapes are zero-padded (never a giant full-dim block)."""
    M, K = a.shape
    K2, N = b.shape
    assert K == K2
    out_dtype = a.dtype
    tm = min(tm, _round_up(M, 8))
    tn = min(tn, _round_up(N, 128))
    tk = min(tk, _round_up(K, 128))
    Mp, Kp, Np = _round_up(M, tm), _round_up(K, tk), _round_up(N, tn)
    if (Mp, Kp) != (M, K):
        a = jnp.pad(a, ((0, Mp - M), (0, Kp - K)))
    if (Kp, Np) != (K, N):
        b = jnp.pad(b, ((0, Kp - K), (0, Np - N)))
    grid = (Mp // tm, Np // tn, Kp // tk)
    out = pl.pallas_call(
        _matmul_kernel,
        out_shape=jax.ShapeDtypeStruct((Mp, Np), out_dtype),
        grid_spec=pltpu.PrefetchScalarGridSpec(
            num_scalar_prefetch=0,
            grid=grid,
            in_specs=[
                pl.BlockSpec((tm, tk), lambda i, j, k: (i, k)),
                pl.BlockSpec((tk, tn), lambda i, j, k: (k, j)),
            ],
            out_specs=pl.BlockSpec((tm, tn), lambda i, j, k: (i, j)),
            scratch_shapes=[pltpu.VMEM((tm, tn), jnp.float32)],
        ),
        compiler_params=pltpu.CompilerParams(
            dimension_semantics=("parallel", "parallel", "arbitrary"),
            vmem_limit_bytes=32 * 1024 * 1024),
    )(a, b)
    if (Mp, Np) != (M, N):
        out = out[:M, :N]
    return out


# ---------------------------------------------------------------------------
# Half-width RoPE table kernel: cos/sin of (B, S, D/2), computed once per batch.
# Positions sit on the sublane axis, freqs on the lane axis (2-D outer product).
# ---------------------------------------------------------------------------
def _rope_table_kernel(pos_ref, inv_ref, cos_ref, sin_ref):
    pos = pos_ref[0].astype(jnp.float32)    # (S, 1)
    inv = inv_ref[...]                      # (1, half)
    freqs = pos * inv                       # (S, half)
    cos_ref[0] = jnp.cos(freqs)
    sin_ref[0] = jnp.sin(freqs)


def pallas_rope_tables(position_ids, inv_freq):
    B, S = position_ids.shape
    half = inv_freq.shape[0]
    pos3 = position_ids.reshape(B, S, 1).astype(jnp.float32)
    inv2 = inv_freq.reshape(1, half).astype(jnp.float32)
    return pl.pallas_call(
        _rope_table_kernel,
        out_shape=(jax.ShapeDtypeStruct((B, S, half), jnp.float32),
                   jax.ShapeDtypeStruct((B, S, half), jnp.float32)),
        grid_spec=pltpu.PrefetchScalarGridSpec(
            num_scalar_prefetch=0,
            grid=(B,),
            in_specs=[
                pl.BlockSpec((1, S, 1), lambda b: (b, 0, 0)),
                pl.BlockSpec((1, half), lambda b: (0, 0)),
            ],
            out_specs=[
                pl.BlockSpec((1, S, half), lambda b: (b, 0, 0)),
                pl.BlockSpec((1, S, half), lambda b: (b, 0, 0)),
            ],
        ),
        compiler_params=pltpu.CompilerParams(
            dimension_semantics=("parallel",)),
    )(pos3, inv2)


# ---------------------------------------------------------------------------
# Fused RoPE + causal flash attention kernel.
# Grid: (batch, q-head, q-block, kv-block); kv-block is the reduction axis.
# GQA handled by k/v index_maps (h // num_key_value_groups).
# ---------------------------------------------------------------------------
def _flash_rope_attn_kernel(q_ref, k_ref, v_ref, cos_q_ref, sin_q_ref,
                            cos_k_ref, sin_k_ref, o_ref,
                            qrot_scr, m_scr, l_scr, acc_scr):
    qi = pl.program_id(2)
    ki = pl.program_id(3)
    tq = q_ref.shape[2]
    tkv = k_ref.shape[2]
    D = q_ref.shape[3]
    half = cos_q_ref.shape[2]
    q_start = qi * tq
    kv_start = ki * tkv

    @pl.when(ki == 0)
    def _init():
        m_scr[...] = jnp.full_like(m_scr, -jnp.inf)
        l_scr[...] = jnp.zeros_like(l_scr)
        acc_scr[...] = jnp.zeros_like(acc_scr)
        # Half-width RoPE on q (once per q block), 1/sqrt(D) folded in, cached
        # in VMEM in the MXU operand dtype.
        q = q_ref[0, 0].astype(jnp.float32)                  # (tq, D)
        cq = cos_q_ref[0]                                    # (tq, half)
        sq = sin_q_ref[0]
        q1 = q[:, :half]
        q2 = q[:, half:]
        qr = jnp.concatenate([q1 * cq - q2 * sq, q2 * cq + q1 * sq], axis=-1)
        scale = 1.0 / (float(D) ** 0.5)
        qrot_scr[...] = (qr * scale).astype(qrot_scr.dtype)

    # Skip KV blocks that lie entirely above the causal diagonal.
    @pl.when(kv_start <= q_start + tq - 1)
    def _compute():
        k = k_ref[0, 0].astype(jnp.float32)                  # (tkv, D)
        ck = cos_k_ref[0]
        sk = sin_k_ref[0]
        k1 = k[:, :half]
        k2 = k[:, half:]
        kr = jnp.concatenate([k1 * ck - k2 * sk, k2 * ck + k1 * sk], axis=-1)
        kr = kr.astype(k_ref.dtype)                          # MXU operand dtype

        s = jnp.dot(qrot_scr[...], kr.T, preferred_element_type=jnp.float32)
        rows = q_start + jax.lax.broadcasted_iota(jnp.int32, (tq, tkv), 0)
        cols = kv_start + jax.lax.broadcasted_iota(jnp.int32, (tq, tkv), 1)
        s = jnp.where(rows >= cols, s, -1e30)                # in-kernel causal mask

        m_prev = m_scr[...]
        m_new = jnp.maximum(m_prev, jnp.max(s, axis=-1, keepdims=True))
        alpha = jnp.exp(m_prev - m_new)
        p = jnp.exp(s - m_new)
        l_scr[...] = alpha * l_scr[...] + jnp.sum(p, axis=-1, keepdims=True)
        acc_scr[...] = alpha * acc_scr[...] + jnp.dot(
            p.astype(v_ref.dtype), v_ref[0, 0],
            preferred_element_type=jnp.float32)
        m_scr[...] = m_new

    @pl.when(ki == pl.num_programs(3) - 1)
    def _finalize():
        inv_l = pl.reciprocal(l_scr[...], approx=True)
        o_ref[0, 0] = (acc_scr[...] * inv_l).astype(o_ref.dtype)


def _pick_tile(S, pref, granule=8):
    """Largest tile <= pref that divides S and is sublane-aligned."""
    if S <= pref:
        return S
    for t in range(pref, granule - 1, -1):
        if S % t == 0 and t % granule == 0:
            return t
    # TODO(synk): pad S to a tile multiple instead of falling back to full S.
    return S


def pallas_flash_rope_attention(q, k, v, cos, sin, *, tq=256, tkv=512):
    """Causal flash attention with fused RoPE.
    q: (B,H,S,D)  k,v: (B,KVH,S,D)  cos,sin: (B,S,D//2) f32."""
    B, H, S, D = q.shape
    KVH = k.shape[1]
    groups = H // KVH
    half = D // 2
    tq = _pick_tile(S, tq)
    tkv = _pick_tile(S, tkv)
    nq = S // tq
    nkv = S // tkv

    itemsize = q.dtype.itemsize
    cost = pl.CostEstimate(
        flops=int(B * H * (2 * S * S * D + 6 * S * D)),      # causal-skipped QK^T + PV
        transcendentals=int(B * H * S * S // 2 + 2 * B * S * half),
        bytes_accessed=int(2 * q.size * itemsize
                           + (k.size + v.size) * itemsize * groups * nq
                           + 2 * cos.size * 4),
    )

    return pl.pallas_call(
        _flash_rope_attn_kernel,
        out_shape=jax.ShapeDtypeStruct((B, H, S, D), q.dtype),
        grid_spec=pltpu.PrefetchScalarGridSpec(
            num_scalar_prefetch=0,
            grid=(B, H, nq, nkv),
            in_specs=[
                pl.BlockSpec((1, 1, tq, D), lambda b, h, i, j: (b, h, i, 0)),
                pl.BlockSpec((1, 1, tkv, D),
                             lambda b, h, i, j: (b, h // groups, j, 0)),
                pl.BlockSpec((1, 1, tkv, D),
                             lambda b, h, i, j: (b, h // groups, j, 0)),
                pl.BlockSpec((1, tq, half), lambda b, h, i, j: (b, i, 0)),
                pl.BlockSpec((1, tq, half), lambda b, h, i, j: (b, i, 0)),
                pl.BlockSpec((1, tkv, half), lambda b, h, i, j: (b, j, 0)),
                pl.BlockSpec((1, tkv, half), lambda b, h, i, j: (b, j, 0)),
            ],
            out_specs=pl.BlockSpec((1, 1, tq, D),
                                   lambda b, h, i, j: (b, h, i, 0)),
            scratch_shapes=[
                pltpu.VMEM((tq, D), q.dtype),        # RoPE'd + pre-scaled q block
                pltpu.VMEM((tq, 1), jnp.float32),    # running max
                pltpu.VMEM((tq, 1), jnp.float32),    # running sum
                pltpu.VMEM((tq, D), jnp.float32),    # output accumulator
            ],
        ),
        compiler_params=pltpu.CompilerParams(
            dimension_semantics=("parallel", "parallel", "parallel",
                                 "arbitrary"),
            vmem_limit_bytes=32 * 1024 * 1024),
        cost_estimate=cost,
    )(q, k, v, cos, sin, cos, sin)


# ---------------------------------------------------------------------------
# Full LlamaAttention forward (causal mask generated in-kernel).
# ---------------------------------------------------------------------------
def llama_attention(hidden_states, position_ids,
                    wq, wk, wv, wo, num_heads, num_kv_heads, inv_freq):
    B, S, hidden = hidden_states.shape
    H, KVH = num_heads, num_kv_heads
    D = hidden // H
    x2d = hidden_states.reshape(B * S, hidden)

    # Fused QKV projection: the activation is read from HBM once.
    w_qkv = jnp.concatenate([wq, wk, wv], axis=0)            # ((H+2*KVH)*D, hidden)
    qkv = pallas_matmul(x2d, w_qkv.T)                        # (B*S, (H+2*KVH)*D)
    q2d = qkv[:, :H * D]
    k2d = qkv[:, H * D:(H + KVH) * D]
    v2d = qkv[:, (H + KVH) * D:]

    # Head split (wrapper-side layout plumbing).
    # TODO(synk): emit the projection output head-major via its out_spec when
    # D % 128 == 0 to eliminate these transpose passes.
    q = q2d.reshape(B, S, H, D).transpose(0, 2, 1, 3)
    k = k2d.reshape(B, S, KVH, D).transpose(0, 2, 1, 3)
    v = v2d.reshape(B, S, KVH, D).transpose(0, 2, 1, 3)

    # Half-width cos/sin tables, once per batch (not per head).
    cos, sin = pallas_rope_tables(position_ids, inv_freq)

    # TODO(synk): only the standard causal mask is generated in-kernel; HF-style
    # padding masks would need per-row valid lengths via scalar prefetch.
    attn = pallas_flash_rope_attention(q, k, v, cos, sin)
    attn2d = attn.transpose(0, 2, 1, 3).reshape(B * S, hidden)
    out = pallas_matmul(attn2d, wo.T)
    return out.reshape(B, S, hidden)


def make_inv_freq(dim, base=10000.0):
    exponents = jnp.arange(0, dim, 2, dtype=jnp.float32) / float(dim)
    return 1.0 / (base ** exponents)  # (dim // 2,)


# ---------------------------------------------------------------------------
# Pure-JAX reference mirroring the PyTorch module (explicit causal mask).
# ---------------------------------------------------------------------------
def reference(hidden_states, position_ids, attention_mask,
              wq, wk, wv, wo, num_heads, num_kv_heads, inv_freq):
    B, S, hidden = hidden_states.shape
    D = hidden // num_heads
    groups = num_heads // num_kv_heads

    q = hidden_states @ wq.T
    k = hidden_states @ wk.T
    v = hidden_states @ wv.T
    q = q.reshape(B, S, num_heads, D).transpose(0, 2, 1, 3)
    k = k.reshape(B, S, num_kv_heads, D).transpose(0, 2, 1, 3)
    v = v.reshape(B, S, num_kv_heads, D).transpose(0, 2, 1, 3)

    pos = position_ids.astype(jnp.float32)
    freqs = pos[:, :, None] * inv_freq[None, None, :]
    emb = jnp.concatenate([freqs, freqs], axis=-1)
    cos = jnp.cos(emb)[:, None, :, :]
    sin = jnp.sin(emb)[:, None, :, :]

    def rot_half(x):
        h = x.shape[-1] // 2
        return jnp.concatenate([-x[..., h:], x[..., :h]], axis=-1)

    qe = q * cos + rot_half(q) * sin
    ke = k * cos + rot_half(k) * sin
    ke = jnp.repeat(ke, groups, axis=1)
    ve = jnp.repeat(v, groups, axis=1)

    scores = qe @ ke.transpose(0, 1, 3, 2) / jnp.sqrt(jnp.float32(D))
    scores = scores + attention_mask
    p = jax.nn.softmax(scores, axis=-1)
    out = p @ ve
    out = out.transpose(0, 2, 1, 3).reshape(B, S, hidden)
    return out @ wo.T


if __name__ == "__main__":
    key = jax.random.PRNGKey(0)
    B, S, hidden = 2, 8, 32
    num_heads, num_kv_heads = 4, 2           # GQA: 2 groups
    D = hidden // num_heads                  # head_dim = 8
    base = 10000.0

    keys = jax.random.split(key, 5)
    hidden_states = jax.random.normal(keys[0], (B, S, hidden), dtype=jnp.float32)
    w_scale = 0.05
    wq = jax.random.normal(keys[1], (num_heads * D, hidden), jnp.float32) * w_scale
    wk = jax.random.normal(keys[2], (num_kv_heads * D, hidden), jnp.float32) * w_scale
    wv = jax.random.normal(keys[3], (num_kv_heads * D, hidden), jnp.float32) * w_scale
    wo = jax.random.normal(keys[4], (hidden, hidden), jnp.float32) * w_scale

    position_ids = jnp.broadcast_to(jnp.arange(S, dtype=jnp.int32)[None, :], (B, S))
    inv_freq = make_inv_freq(D, base)

    out = llama_attention(hidden_states, position_ids,
                          wq, wk, wv, wo, num_heads, num_kv_heads, inv_freq)
    out = jax.block_until_ready(out)

    # Reference applies the equivalent HF-style additive causal mask explicitly.
    causal = jnp.tril(jnp.ones((S, S), dtype=bool))
    attn_mask = jnp.where(causal, 0.0, -1e9).astype(jnp.float32)
    attn_mask = jnp.broadcast_to(attn_mask[None, None], (B, 1, S, S))
    ref = reference(hidden_states, position_ids, attn_mask,
                    wq, wk, wv, wo, num_heads, num_kv_heads, inv_freq)

    assert out.shape == (B, S, hidden)
    assert out.dtype == hidden_states.dtype
    assert jnp.allclose(out, ref, atol=1e-2, rtol=1e-2), \
        float(jnp.max(jnp.abs(out - ref)))

    print("KERNEL_OK")
</pallas_src>

<mosaic_0001>
module attributes {stable_mosaic.version = 11 : i64} {
  func.func @_matmul_kernel(%arg0: i32, %arg1: i32, %arg2: i32, %arg3: memref<16x128xf32, #tpu.memory_space<vmem>>, %arg4: memref<128x128xf32, #tpu.memory_space<vmem>>, %arg5: memref<16x128xf32, #tpu.memory_space<vmem>>, %arg6: memref<16x128xf32, #tpu.memory_space<vmem>>) attributes {dimension_semantics = [#tpu.dimension_semantics<parallel>, #tpu.dimension_semantics<parallel>, #tpu.dimension_semantics<arbitrary>], iteration_bounds = array<i64: 1, 1, 1>, scalar_prefetch = 0 : i64, scratch_operands = 1 : i64, tpu.core_type = #tpu.core_type<tc>, window_params = [{transform_indices = @transform_0, window_bounds = array<i64: 16, 128>}, {transform_indices = @transform_1, window_bounds = array<i64: 128, 128>}, {transform_indices = @transform_2, window_bounds = array<i64: 16, 128>}]} {
    %c0_i32 = arith.constant 0 : i32
    %0 = arith.cmpi eq, %arg2, %c0_i32 : i32
    %1 = arith.extui %0 : i1 to i32
    %c0_i32_0 = arith.constant 0 : i32
    %2 = arith.cmpi ne, %1, %c0_i32_0 : i32
    scf.if %2 {
      %cst_10 = arith.constant 0.000000e+00 : f32
      %12 = vector.broadcast %cst_10 : f32 to vector<16x128xf32>
      %c0_11 = arith.constant 0 : index
      %c0_12 = arith.constant 0 : index
      %13 = vector.load %arg6[%c0_11, %c0_12] : memref<16x128xf32, #tpu.memory_space<vmem>>, vector<16x128xf32>
      tpu.vector_store %arg6[%c0_11, %c0_12], %12 {strides = array<i32>} : memref<16x128xf32, #tpu.memory_space<vmem>>, vector<16x128xf32>,
    } else {
    }
    %c0 = arith.constant 0 : index
    %c0_1 = arith.constant 0 : index
    %3 = vector.load %arg6[%c0, %c0_1] : memref<16x128xf32, #tpu.memory_space<vmem>>, vector<16x128xf32>
    %c0_2 = arith.constant 0 : index
    %c0_3 = arith.constant 0 : index
    %4 = vector.load %arg3[%c0_2, %c0_3] : memref<16x128xf32, #tpu.memory_space<vmem>>, vector<16x128xf32>
    %c0_4 = arith.constant 0 : index
    %c0_5 = arith.constant 0 : index
    %5 = vector.load %arg4[%c0_4, %c0_5] : memref<128x128xf32, #tpu.memory_space<vmem>>, vector<128x128xf32>
    %cst = arith.constant dense<0.000000e+00> : vector<16x128xf32>
    %6 = tpu.matmul %4, %5, %cst {dimension_numbers = #tpu.dot_dimension_numbers<[1], [0], [0], [1], [0, 0, 1, 1], [], []>} : vector<16x128xf32>, vector<128x128xf32>, vector<16x128xf32> -> vector<16x128xf32>
    %7 = arith.addf %3, %6 : vector<16x128xf32>
    %c0_6 = arith.constant 0 : index
    %c0_7 = arith.constant 0 : index
    %8 = vector.load %arg6[%c0_6, %c0_7] : memref<16x128xf32, #tpu.memory_space<vmem>>, vector<16x128xf32>
    tpu.vector_store %arg6[%c0_6, %c0_7], %7 {strides = array<i32>} : memref<16x128xf32, #tpu.memory_space<vmem>>, vector<16x128xf32>,
    %c0_i32_8 = arith.constant 0 : i32
    %9 = arith.cmpi eq, %arg2, %c0_i32_8 : i32
    %10 = arith.extui %9 : i1 to i32
    %c0_i32_9 = arith.constant 0 : i32
    %11 = arith.cmpi ne, %10, %c0_i32_9 : i32
    scf.if %11 {
      %c0_10 = arith.constant 0 : index
      %c0_11 = arith.constant 0 : index
      %12 = vector.load %arg6[%c0_10, %c0_11] : memref<16x128xf32, #tpu.memory_space<vmem>>, vector<16x128xf32>
      %c0_12 = arith.constant 0 : index
      %c0_13 = arith.constant 0 : index
      %13 = vector.load %arg5[%c0_12, %c0_13] : memref<16x128xf32, #tpu.memory_space<vmem>>, vector<16x128xf32>
      tpu.vector_store %arg5[%c0_12, %c0_13], %12 {strides = array<i32>} : memref<16x128xf32, #tpu.memory_space<vmem>>, vector<16x128xf32>,
    } else {
    }
    return
  }
  func.func @transform_0(%arg0: i32, %arg1: i32, %arg2: i32) -> (i32, i32) {
    %c0_i32 = arith.constant 0 : i32
    return %arg0, %arg2 : i32, i32
  }
  func.func @transform_1(%arg0: i32, %arg1: i32, %arg2: i32) -> (i32, i32) {
    %c0_i32 = arith.constant 0 : i32
    return %arg2, %arg1 : i32, i32
  }
  func.func @transform_2(%arg0: i32, %arg1: i32, %arg2: i32) -> (i32, i32) {
    %c0_i32 = arith.constant 0 : i32
    return %arg0, %arg1 : i32, i32
  }
}

</mosaic_0001>

<llo_original>
// kernel: tpu_custom_call.1
$region0: #{tpu_custom_call.1}
  #allocation0 [shape = 'u32[]', space=smem, size = 0x4, offset = 0x4, fixed_abs, tag = 'smem constant byte address 0x4 - core index']
  #allocation1 [shape = 'u32[144,128]{1,0:T(1,128)}', space=vmem, size = 0x12000, scoped, tag = 'internal scratch']
  #allocation2 [shape = 'f32[16,128]{1,0:T(8,128)}', space=vmem, size = 0x2000, scoped, tag = 'scratch operand']
  %s0 = inlined_call_operand.hbm [shape: f32[16,128], index: 0, kind: input, shape index: {}]
  %s1 = inlined_call_operand.hbm [shape: f32[128,128], index: 1, kind: input, shape index: {}]
  %s2 = inlined_call_operand.hbm [shape: f32[16,128], index: 2, kind: output, shape index: {}]
  %s3 = sld [smem:[#allocation0]]
  $region34: #{tpu_custom_call.1} parent=0
    _
  %s5 = ssub.s32 1, %s3
  %s6 = scalar_select 0, %s5, %s3
  $region1: #{tpu_custom_call.1} parent=0
    #allocation3 [shape = 'u8[8192]{0}', space=vmem, size = 0x2000, scoped, tag = 'input window, operand 0, single buffered']
    #allocation4 [shape = 's32[1]{0}', space=sflag, size = 0x4, scoped, tag = 'scoped memory for tpu_custom_call.1']
    #allocation5 [shape = 's32[1]{0}', space=sflag, size = 0x4, scoped, tag = 'scoped memory for tpu_custom_call.1']
    #allocation6 [shape = 'u8[65536]{0}', space=vmem, size = 0x10000, scoped, tag = 'input window, operand 1, single buffered']
    #allocation7 [shape = 's32[1]{0}', space=sflag, size = 0x4, scoped, tag = 'scoped memory for tpu_custom_call.1']
    #allocation8 [shape = 'u8[8192]{0}', space=vmem, size = 0x2000, scoped, tag = 'output window, operand 0, single buffered']
    %7 = vsyncpa [#allocation4], 0
    %8 = vsyncpa [#allocation7], 0
    %9 = vsyncpa [#allocation5], 0
    // Predicated region
    $region2: #{tpu_custom_call.1} parent=1 // pred_check
      _
    $region3: #{tpu_custom_call.1} parent=1 // pred_check_branch
      %11 = sbr.rel (0) target = $region5
    $region4: #{tpu_custom_call.1} parent=1 // pred_region
      %s13 = ssub.s32 256, 256
      %14 = vsyncadd [#allocation4], %s13
      %s15 = sshll.u32 [#allocation3], 4
      %s16 = int_to_ptr.vmem [resolvable:$true] %s15
      %21 = dma.hbm_to_vmem [thread:$0]  %s0, 256, %s16, [#allocation4], 128, 128, 8
    $region5: #{tpu_custom_call.1} parent=1 // pred_fallthru
      _
    // Predicated region
    $region6: #{tpu_custom_call.1} parent=1 // pred_check
      _
    $region7: #{tpu_custom_call.1} parent=1 // pred_check_branch
      %23 = sbr.rel (0) target = $region9
    $region8: #{tpu_custom_call.1} parent=1 // pred_region
      %s25 = ssub.s32 2048, 2048
      %26 = vsyncadd [#allocation7], %s25
      %s27 = sshll.u32 [#allocation6], 4
      %s28 = int_to_ptr.vmem [resolvable:$true] %s27
      %33 = dma.hbm_to_vmem [thread:$0]  %s1, 2048, %s28, [#allocation7], 128, 128, 8
    $region9: #{tpu_custom_call.1} parent=1 // pred_fallthru
      _
    // Predicated region
    $region10: #{tpu_custom_call.1} parent=1 // pred_check
      _
    $region11: #{tpu_custom_call.1} parent=1 // pred_check_branch
      %35 = sbr.rel (0) target = $region13
    $region12: #{tpu_custom_call.1} parent=1 // pred_region
      %36 = dma.done [#allocation4], 256
    $region13: #{tpu_custom_call.1} parent=1 // pred_fallthru
      _
    // Predicated region
    $region14: #{tpu_custom_call.1} parent=1 // pred_check
      _
    $region15: #{tpu_custom_call.1} parent=1 // pred_check_branch
      %38 = sbr.rel (0) target = $region17
    $region16: #{tpu_custom_call.1} parent=1 // pred_region
      %39 = dma.done [#allocation7], 2048
    $region17: #{tpu_custom_call.1} parent=1 // pred_fallthru
      _
    %p40 = scmp.eq.s32.totalorder 0, 0
    // Predicated region
    $region18: #{tpu_custom_call.1} parent=1 // pred_check
      %p41 = pneg %p40
    $region19: #{tpu_custom_call.1} parent=1 // pred_check_branch
      %43 = sbr.rel (%p41) target = $region21
    $region20: #{tpu_custom_call.1} parent=1 // pred_region
      %44 = vst [vmem:[#allocation2] sm:$0xff] 0.0
      %45 = vst [vmem:[#allocation2 + $0x8] sm:$0xff] 0.0
    $region21: #{tpu_custom_call.1} parent=1 // pred_fallthru
      _
    %v46 = vld [vmem:[#allocation2] sm:$0xff]
    %v47 = vld [vmem:[#allocation2 + $0x8] sm:$0xff]
    %v48 = vld [vmem:[#allocation3] sm:$0xff]
    %v49 = vld [vmem:[#allocation3 + $0x8] sm:$0xff]
    %v50 = vld [vmem:[#allocation6] sm:$0xff]
    %v51 = vld [vmem:[#allocation6 + $0x8] sm:$0xff]
    %v52 = vld [vmem:[#allocation6 + $0x10] sm:$0xff]
    %v53 = vld [vmem:[#allocation6 + $0x18] sm:$0xff]
    %v54 = vld [vmem:[#allocation6 + $0x20] sm:$0xff]
    %v55 = vld [vmem:[#allocation6 + $0x28] sm:$0xff]
    %v56 = vld [vmem:[#allocation6 + $0x30] sm:$0xff]
    %v57 = vld [vmem:[#allocation6 + $0x38] sm:$0xff]
    %v58 = vld [vmem:[#allocation6 + $0x40] sm:$0xff]
    %v59 = vld [vmem:[#allocation6 + $0x48] sm:$0xff]
    %v60 = vld [vmem:[#allocation6 + $0x50] sm:$0xff]
    %v61 = vld [vmem:[#allocation6 + $0x58] sm:$0xff]
    %v62 = vld [vmem:[#allocation6 + $0x60] sm:$0xff]
    %v63 = vld [vmem:[#allocation6 + $0x68] sm:$0xff]
    %v64 = vld [vmem:[#allocation6 + $0x70] sm:$0xff]
    %v65 = vld [vmem:[#allocation6 + $0x78] sm:$0xff]
    %66 = vmatprep.subr.mxu0 0.0
    %67 = vmatpush1.msra.mxu0 %v65
    %68 = vmatprep.subr.mxu0 0.0
    %69 = vmatpush1.msra.mxu0 %v64
    %70 = vmatprep.subr.mxu0 0.0
    %71 = vmatpush1.msra.mxu0 %v63
    %72 = vmatprep.subr.mxu0 0.0
    %73 = vmatpush1.msra.mxu0 %v62
    %74 = vmatprep.subr.mxu0 0.0
    %75 = vmatpush1.msra.mxu0 %v61
    %76 = vmatprep.subr.mxu0 0.0
    %77 = vmatpush1.msra.mxu0 %v60
    %78 = vmatprep.subr.mxu0 0.0
    %79 = vmatpush1.msra.mxu0 %v59
    %80 = vmatprep.subr.mxu0 0.0
    %81 = vmatpush1.msra.mxu0 %v58
    %82 = vmatprep.subr.mxu0 0.0
    %83 = vmatpush1.msra.mxu0 %v57
    %84 = vmatprep.subr.mxu0 0.0
    %85 = vmatpush1.msra.mxu0 %v56
    %86 = vmatprep.subr.mxu0 0.0
    %87 = vmatpush1.msra.mxu0 %v55
    %88 = vmatprep.subr.mxu0 0.0
    %89 = vmatpush1.msra.mxu0 %v54
    %90 = vmatprep.subr.mxu0 0.0
    %91 = vmatpush1.msra.mxu0 %v53
    %92 = vmatprep.subr.mxu0 0.0
    %93 = vmatpush1.msra.mxu0 %v52
    %94 = vmatprep.subr.mxu0 0.0
    %95 = vmatpush1.msra.mxu0 %v51
    %96 = vmatprep.subr.mxu0 0.0
    %97 = vmatpush1.msra.mxu0 %v50
    %98 = vmatprep.subr.mxu0 0.0
    %99 = vmatpush2.msra.mxu0 0.0
    %100 = vmatprep.subr.mxu0 0.0
    %101 = vmatpush2.msra.mxu0 0.0
    %102 = vmatprep.subr.mxu0 0.0
    %103 = vmatpush2.msra.mxu0 0.0
    %104 = vmatprep.subr.mxu0 0.0
    %105 = vmatpush2.msra.mxu0 0.0
    %106 = vmatprep.subr.mxu0 0.0
    %107 = vmatpush2.msra.mxu0 0.0
    %108 = vmatprep.subr.mxu0 0.0
    %109 = vmatpush2.msra.mxu0 0.0
    %110 = vmatprep.subr.mxu0 0.0
    %111 = vmatpush2.msra.mxu0 0.0
    %112 = vmatprep.subr.mxu0 0.0
    %113 = vmatpush2.msra.mxu0 0.0
    %114 = vmatprep.subr.mxu0 0.0
    %115 = vmatpush2.msra.mxu0 0.0
    %116 = vmatprep.subr.mxu0 0.0
    %117 = vmatpush2.msra.mxu0 0.0
    %118 = vmatprep.subr.mxu0 0.0
    %119 = vmatpush2.msra.mxu0 0.0
    %120 = vmatprep.subr.mxu0 0.0
    %121 = vmatpush2.msra.mxu0 0.0
    %122 = vmatprep.subr.mxu0 0.0
    %123 = vmatpush2.msra.mxu0 0.0
    %124 = vmatprep.subr.mxu0 0.0
    %125 = vmatpush2.msra.mxu0 0.0
    %126 = vmatprep.subr.mxu0 0.0
    %127 = vmatpush2.msra.mxu0 0.0
    %128 = vmatprep.subr.mxu0 0.0
    %129 = vmatpush2.msra.mxu0 0.0
    %130 = vmatprep.mubr.f32.mxu0 0.0
    %131 = vmatmul.mubr.f32.gmra.mxu0 %v48
    %v132 = vpop.f32.mrf.mxu0
    %v133 = vadd.f32 0.0, %v132
    %v134 = vpop.f32.mrf.mxu0
    %135 = vmatprep.mubr.f32.mxu0 0.0
    %136 = vmatmul.mubr.f32.gmra.mxu0 %v49
    %v137 = vpop.f32.mrf.mxu0
    %v138 = vadd.f32 0.0, %v137
    %v139 = vpop.f32.mrf.mxu0
    %140 = vdwg.mxu0
    %v141 = vadd.f32 %v46, %v133
    %v142 = vadd.f32 %v47, %v138
    %143 = vst [vmem:[#allocation2] sm:$0xff] %v141
    %144 = vst [vmem:[#allocation2 + $0x8] sm:$0xff] %v142
    // Predicated region
    $region22: #{tpu_custom_call.1} parent=1 // pred_check
      %p145 = pneg %p40
    $region23: #{tpu_custom_call.1} parent=1 // pred_check_branch
      %147 = sbr.rel (%p145) target = $region25
    $region24: #{tpu_custom_call.1} parent=1 // pred_region
      %v148 = vld [vmem:[#allocation2] sm:$0xff]
      %v149 = vld [vmem:[#allocation2 + $0x8] sm:$0xff]
      %150 = vst [vmem:[#allocation8] sm:$0xff] %v148
      %151 = vst [vmem:[#allocation8 + $0x8] sm:$0xff] %v149
    $region25: #{tpu_custom_call.1} parent=1 // pred_fallthru
      _
    // Predicated region
    $region26: #{tpu_custom_call.1} parent=1 // pred_check
      _
    $region27: #{tpu_custom_call.1} parent=1 // pred_check_branch
      %153 = sbr.rel (0) target = $region29
    $region28: #{tpu_custom_call.1} parent=1 // pred_region
      %s155 = ssub.s32 256, 256
      %156 = vsyncadd [#allocation5], %s155
      %s157 = sshll.u32 [#allocation8], 4
      %s158 = int_to_ptr.vmem [resolvable:$true] %s157
      %163 = dma.vmem_to_hbm [thread:$0]  %s158, 256, %s2, [#allocation5], 128, 128, 8
    $region29: #{tpu_custom_call.1} parent=1 // pred_fallthru
      _
    // Predicated region
    $region30: #{tpu_custom_call.1} parent=1 // pred_check
      _
    $region31: #{tpu_custom_call.1} parent=1 // pred_check_branch
      %165 = sbr.rel (0) target = $region33
    $region32: #{tpu_custom_call.1} parent=1 // pred_region
      %166 = dma.done [#allocation5], 256
    $region33: #{tpu_custom_call.1} parent=1 // pred_fallthru
      _
    %167 = vsyncpa [#allocation4], 1
    %168 = vsyncpa [#allocation7], 1
    %169 = vsyncpa [#allocation5], 1

</llo_original>
